<compile_context>
chip_gen: v6e
topology: v6e:2x2x1
jax: 0.10.0
libtpu: 0.0.40
codegen_flags: <defaults>
</compile_context>

<pallas_src>
import jax
import jax.numpy as jnp
from jax import lax
from jax.experimental import pallas as pl
from jax.experimental.pallas import tpu as pltpu


_LANE = 128
_SUBLANE = 8
_PREFERRED_TILE = 512   # roofline sweet spot; <= (1024,1024) fits v5e/v6e/v7x VMEM


def _pick_tile(n, preferred, align):
    """Largest multiple of `align` <= min(preferred, n) that divides n;
    fall back to the full extent n (always a legal block size)."""
    t = min(preferred, n)
    t -= t % align
    while t >= align:
        if n % t == 0:
            return t
        t -= align
    return n


def _pad_features(x, multiple=_LANE):
    """Zero-pad the (tiny) feature axis to a lane-aligned width.
    Zero padding changes neither the Gram matrix nor the squared norms."""
    n, f = x.shape
    fp = max(multiple, ((f + multiple - 1) // multiple) * multiple)
    if fp == f:
        return x
    return jnp.pad(x, ((0, 0), (0, fp - f)))


def _dist_tile(xr, xc, rsq, csq):
    """||x_i - x_j||^2 tile = rsq + csq - 2 <x_i, x_j>, clamped at 0.
    NT contraction (both operands contract their feature axis) -> no transpose
    of X is ever materialized."""
    g = lax.dot_general(xr, xc, (((1,), (1,)), ((), ())),
                        preferred_element_type=jnp.float32)
    return jnp.maximum(rsq + csq - 2.0 * g, 0.0)


# ---------------------------------------------------------------------------
# Kernel 1: tiled pairwise squared distances D[i,j] (needed for k-NN bandwidth)
# ---------------------------------------------------------------------------
def _sqdist_kernel(xr_ref, xc_ref, rsq_ref, csq_ref, d_ref):
    d_ref[...] = _dist_tile(xr_ref[...], xc_ref[...], rsq_ref[...], csq_ref[...])


def pairwise_sqdist(x_pad, rsq, csq):
    n, fp = x_pad.shape
    tr = _pick_tile(n, _PREFERRED_TILE, _SUBLANE)
    tc = _pick_tile(n, _PREFERRED_TILE, _LANE)
    return pl.pallas_call(
        _sqdist_kernel,
        out_shape=jax.ShapeDtypeStruct((n, n), jnp.float32),
        grid=(n // tr, n // tc),
        in_specs=[
            pl.BlockSpec((tr, fp), lambda i, j: (i, 0)),   # X row tile
            pl.BlockSpec((tc, fp), lambda i, j: (j, 0)),   # X col tile (same array)
            pl.BlockSpec((tr, 1), lambda i, j: (i, 0)),    # row squared norms
            pl.BlockSpec((1, tc), lambda i, j: (0, j)),    # col squared norms
        ],
        out_specs=pl.BlockSpec((tr, tc), lambda i, j: (i, j)),
        compiler_params=pltpu.CompilerParams(
            dimension_semantics=("parallel", "parallel")),
    )(x_pad, x_pad, rsq, csq)


# ---------------------------------------------------------------------------
# Kernel 2 (pass A): degrees  deg_j = sum_i exp(-D_ij / eps)
# Distance tiles are recomputed from X (cheap matmul) so D is never re-read
# from HBM. Output is lane-dense (1, N). Reduction over row tiles (last axis).
# ---------------------------------------------------------------------------
def _degree_kernel(xr_ref, xc_ref, rsq_ref, csq_ref, nie_ref, deg_ref):
    @pl.when(pl.program_id(1) == 0)
    def _():
        deg_ref[...] = jnp.zeros_like(deg_ref)

    d = _dist_tile(xr_ref[...], xc_ref[...], rsq_ref[...], csq_ref[...])
    k = jnp.exp(d * nie_ref[0])                       # exp(-D/eps)
    deg_ref[...] += jnp.sum(k, axis=0, keepdims=True)  # (1, tc) column sums


def compute_degrees(x_pad, rsq, csq, neg_inv_eps):
    n, fp = x_pad.shape
    tr = _pick_tile(n, _PREFERRED_TILE, _SUBLANE)
    tc = _pick_tile(n, _PREFERRED_TILE, _LANE)
    nie = jnp.asarray(neg_inv_eps, jnp.float32).reshape((1,))
    return pl.pallas_call(
        _degree_kernel,
        out_shape=jax.ShapeDtypeStruct((1, n), jnp.float32),
        grid=(n // tc, n // tr),     # (parallel output columns, reduction rows)
        in_specs=[
            pl.BlockSpec((tr, fp), lambda j, i: (i, 0)),
            pl.BlockSpec((tc, fp), lambda j, i: (j, 0)),
            pl.BlockSpec((tr, 1), lambda j, i: (i, 0)),
            pl.BlockSpec((1, tc), lambda j, i: (0, j)),
            pl.BlockSpec(memory_space=pltpu.MemorySpace.SMEM),
        ],
        out_specs=pl.BlockSpec((1, tc), lambda j, i: (0, j)),
        compiler_params=pltpu.CompilerParams(
            dimension_semantics=("parallel", "arbitrary")),
    )(x_pad, x_pad, rsq, csq, nie)


# ---------------------------------------------------------------------------
# Kernel 3 (pass B): S = D^{-1/2} K D^{-1/2}, tiled, both axes parallel.
# ---------------------------------------------------------------------------
def _normalize_kernel(xr_ref, xc_ref, rsq_ref, csq_ref, dr_ref, dc_ref,
                      nie_ref, s_ref):
    d = _dist_tile(xr_ref[...], xc_ref[...], rsq_ref[...], csq_ref[...])
    k = jnp.exp(d * nie_ref[0])
    s_ref[...] = k * lax.rsqrt(dr_ref[...]) * lax.rsqrt(dc_ref[...])


def normalized_affinity(x_pad, rsq, csq, deg_row, deg_col, neg_inv_eps):
    n, fp = x_pad.shape
    tr = _pick_tile(n, _PREFERRED_TILE, _SUBLANE)
    tc = _pick_tile(n, _PREFERRED_TILE, _LANE)
    nie = jnp.asarray(neg_inv_eps, jnp.float32).reshape((1,))
    return pl.pallas_call(
        _normalize_kernel,
        out_shape=jax.ShapeDtypeStruct((n, n), jnp.float32),
        grid=(n // tr, n // tc),
        in_specs=[
            pl.BlockSpec((tr, fp), lambda i, j: (i, 0)),
            pl.BlockSpec((tc, fp), lambda i, j: (j, 0)),
            pl.BlockSpec((tr, 1), lambda i, j: (i, 0)),
            pl.BlockSpec((1, tc), lambda i, j: (0, j)),
            pl.BlockSpec((tr, 1), lambda i, j: (i, 0)),    # deg_i
            pl.BlockSpec((1, tc), lambda i, j: (0, j)),    # deg_j
            pl.BlockSpec(memory_space=pltpu.MemorySpace.SMEM),
        ],
        out_specs=pl.BlockSpec((tr, tc), lambda i, j: (i, j)),
        compiler_params=pltpu.CompilerParams(
            dimension_semantics=("parallel", "parallel")),
    )(x_pad, x_pad, rsq, csq, deg_row, deg_col, nie)


# ---------------------------------------------------------------------------
# Module
# ---------------------------------------------------------------------------
class FixedDiffusionMapEmbedding:
    """JAX/Pallas port: precomputes diffusion coordinates in __init__ and
    returns them from forward(), exactly like the PyTorch module."""

    def __init__(self, X, t=1, k=8, precompute=True, embedding_dimension=2, **kwargs):
        assert precompute, "dynamic (precompute=False) path not implemented upstream"
        self.t = t

        X = jnp.asarray(X, jnp.float32)                    # [N, F]
        n = X.shape[0]

        # Lane-align the feature axis once in the wrapper (cheap, O(N*F)).
        x_pad = _pad_features(X)

        # Squared norms computed once and reused by all tiled kernels, as a
        # (N, 1) row view and a lane-dense (1, N) column view.
        sq = jnp.sum(x_pad * x_pad, axis=1)
        rsq = sq.reshape(n, 1)
        csq = sq.reshape(1, n)

        # ---- Pallas: tiled pairwise squared distances ---------------------
        d_sq = pairwise_sqdist(x_pad, rsq, csq)            # [N, N]

        # k-NN bandwidth: mean squared distance to the k-th nearest neighbor.
        # TODO(synk): per-row sort / k-th selection has no clean Pallas
        # equivalent; done in plain JAX on the Pallas-produced distances.
        kk = min(int(k), n - 1)
        d_sorted = jnp.sort(d_sq, axis=-1)                 # column 0 is self (0)
        eps = jnp.maximum(jnp.mean(d_sorted[:, kk]), 1e-12)
        neg_inv_eps = -1.0 / eps

        # ---- Pallas: degrees (recomputes D tiles from X; lane-dense output)
        deg_col = compute_degrees(x_pad, rsq, csq, neg_inv_eps)   # (1, N)
        deg_row = deg_col.reshape(n, 1)                           # (N, 1)

        # ---- Pallas: symmetric normalization S = D^{-1/2} K D^{-1/2} -------
        s_mat = normalized_affinity(x_pad, rsq, csq, deg_row, deg_col,
                                    neg_inv_eps)                  # [N, N]

        # ---- Eigendecomposition (plain JAX glue) ---------------------------
        # TODO(synk): symmetric eigendecomposition has no Pallas equivalent.
        w, v = jnp.linalg.eigh(s_mat)                      # ascending
        w = w[::-1]                                        # descending
        v = v[:, ::-1]

        # Markov-chain eigenvectors: psi = D^{-1/2} phi.
        psi = v * lax.rsqrt(deg_row)                       # [N, N]

        # Diffusion coordinates: lambda_i^t * psi_i, skipping the trivial
        # (constant, lambda≈1) eigenvector.
        sel = psi[:, 1:1 + embedding_dimension]            # [N, E]
        lam = w[1:1 + embedding_dimension] ** t            # [E] (>= 0: S is PSD)

        # eigh signs are arbitrary; canonicalize (largest-|.| entry positive)
        # so the PyTorch-style signed-max rescaling below is deterministic.
        pick = jnp.argmax(jnp.abs(sel), axis=0)
        signs = jnp.sign(sel[pick, jnp.arange(sel.shape[1])])
        signs = jnp.where(signs == 0, 1.0, signs)
        coords = (sel * signs) * lam

        # Mirror the PyTorch post-processing: .real, then 2 * (coords / max).
        coords = jnp.real(coords).astype(jnp.float32)
        coords = 2.0 * (coords / jnp.max(coords))
        self.diff_coords = coords                          # [N, E]

    def __call__(self, X, **kwargs):
        # forward(X) ignores X and returns the precomputed diffusion map.
        # (The previous Pallas copy kernel was a pure HBM round trip; removed.)
        return self.diff_coords


# ---------------------------------------------------------------------------
if __name__ == "__main__":
    key = jax.random.PRNGKey(0)
    N, F = 32, 4                      # small point cloud: 32 points, 4 features
    X = jax.random.normal(key, (N, F), dtype=jnp.float32)

    module = FixedDiffusionMapEmbedding(X, t=1, k=8, embedding_dimension=2)
    out = module(X)                   # forward pass
    out = jax.block_until_ready(out)

    assert out.shape == (N, 2), out.shape
    assert out.dtype == jnp.float32
    assert bool(jnp.all(jnp.isfinite(out)))
    print("KERNEL_OK")
</pallas_src>

<mosaic_0001>
module attributes {stable_mosaic.version = 11 : i64} {
  func.func @_sqdist_kernel(%arg0: i32, %arg1: i32, %arg2: memref<32x128xf32, #tpu.memory_space<vmem>>, %arg3: memref<32x128xf32, #tpu.memory_space<vmem>>, %arg4: memref<32x1xf32, #tpu.memory_space<vmem>>, %arg5: memref<1x32xf32, #tpu.memory_space<vmem>>, %arg6: memref<32x32xf32, #tpu.memory_space<vmem>>) attributes {dimension_semantics = [#tpu.dimension_semantics<parallel>, #tpu.dimension_semantics<parallel>], iteration_bounds = array<i64: 1, 1>, scalar_prefetch = 0 : i64, scratch_operands = 0 : i64, tpu.core_type = #tpu.core_type<tc>, window_params = [{transform_indices = @transform_0, window_bounds = array<i64: 32, 128>}, {transform_indices = @transform_1, window_bounds = array<i64: 32, 128>}, {transform_indices = @transform_2, window_bounds = array<i64: 32, 1>}, {transform_indices = @transform_3, window_bounds = array<i64: 1, 32>}, {transform_indices = @transform_4, window_bounds = array<i64: 32, 32>}]} {
    %c0 = arith.constant 0 : index
    %c0_0 = arith.constant 0 : index
    %0 = vector.load %arg2[%c0, %c0_0] : memref<32x128xf32, #tpu.memory_space<vmem>>, vector<32x128xf32>
    %c0_1 = arith.constant 0 : index
    %c0_2 = arith.constant 0 : index
    %1 = vector.load %arg3[%c0_1, %c0_2] : memref<32x128xf32, #tpu.memory_space<vmem>>, vector<32x128xf32>
    %c0_3 = arith.constant 0 : index
    %c0_4 = arith.constant 0 : index
    %2 = vector.load %arg4[%c0_3, %c0_4] : memref<32x1xf32, #tpu.memory_space<vmem>>, vector<32x1xf32>
    %c0_5 = arith.constant 0 : index
    %c0_6 = arith.constant 0 : index
    %3 = vector.load %arg5[%c0_5, %c0_6] : memref<1x32xf32, #tpu.memory_space<vmem>>, vector<1x32xf32>
    %cst = arith.constant dense<0.000000e+00> : vector<32x32xf32>
    %4 = tpu.matmul %0, %1, %cst {dimension_numbers = #tpu.dot_dimension_numbers<[1], [1], [0], [0], [0, 0, 1, 0], [], []>} : vector<32x128xf32>, vector<32x128xf32>, vector<32x32xf32> -> vector<32x32xf32>
    %5 = vector.broadcast %2 : vector<32x1xf32> to vector<32x32xf32>
    %6 = vector.broadcast %3 : vector<1x32xf32> to vector<32x32xf32>
    %7 = arith.addf %5, %6 : vector<32x32xf32>
    %cst_7 = arith.constant 2.000000e+00 : f32
    %8 = vector.broadcast %cst_7 : f32 to vector<32x32xf32>
    %9 = arith.mulf %8, %4 : vector<32x32xf32>
    %10 = arith.subf %7, %9 : vector<32x32xf32>
    %cst_8 = arith.constant 0.000000e+00 : f32
    %11 = vector.broadcast %cst_8 : f32 to vector<32x32xf32>
    %12 = arith.maximumf %10, %11 : vector<32x32xf32>
    %c0_9 = arith.constant 0 : index
    %c0_10 = arith.constant 0 : index
    %13 = vector.load %arg6[%c0_9, %c0_10] : memref<32x32xf32, #tpu.memory_space<vmem>>, vector<32x32xf32>
    tpu.vector_store %arg6[%c0_9, %c0_10], %12 {strides = array<i32>} : memref<32x32xf32, #tpu.memory_space<vmem>>, vector<32x32xf32>,
    return
  }
  func.func @transform_0(%arg0: i32, %arg1: i32) -> (i32, i32) {
    %c0_i32 = arith.constant 0 : i32
    %c0_i32_0 = arith.constant 0 : i32
    return %arg0, %c0_i32 : i32, i32
  }
  func.func @transform_1(%arg0: i32, %arg1: i32) -> (i32, i32) {
    %c0_i32 = arith.constant 0 : i32
    %c0_i32_0 = arith.constant 0 : i32
    return %arg1, %c0_i32 : i32, i32
  }
  func.func @transform_2(%arg0: i32, %arg1: i32) -> (i32, i32) {
    %c0_i32 = arith.constant 0 : i32
    %c0_i32_0 = arith.constant 0 : i32
    return %arg0, %c0_i32 : i32, i32
  }
  func.func @transform_3(%arg0: i32, %arg1: i32) -> (i32, i32) {
    %c0_i32 = arith.constant 0 : i32
    %c0_i32_0 = arith.constant 0 : i32
    return %c0_i32, %arg1 : i32, i32
  }
  func.func @transform_4(%arg0: i32, %arg1: i32) -> (i32, i32) {
    %c0_i32 = arith.constant 0 : i32
    return %arg0, %arg1 : i32, i32
  }
}

</mosaic_0001>

<llo_original>
// kernel: tpu_custom_call.1
$region0: #{tpu_custom_call.1}
  #allocation0 [shape = 'u32[]', space=smem, size = 0x4, offset = 0x4, fixed_abs, tag = 'smem constant byte address 0x4 - core index']
  #allocation1 [shape = 'u32[144,128]{1,0:T(1,128)}', space=vmem, size = 0x12000, scoped, tag = 'internal scratch']
  %s0 = inlined_call_operand.vmem [shape: f32[32,128], index: 0, kind: input, shape index: {}]
  %s1 = inlined_call_operand.hbm [shape: f32[32,128], index: 1, kind: input, shape index: {}]
  %s2 = inlined_call_operand.vmem [shape: f32[32,1], index: 2, kind: input, shape index: {}]
  %s3 = inlined_call_operand.vmem [shape: f32[1,32], index: 3, kind: input, shape index: {}]
  %s4 = inlined_call_operand.hbm [shape: f32[32,32], index: 4, kind: output, shape index: {}]
  %s5 = sld [smem:[#allocation0]]
  $region30: #{tpu_custom_call.1} parent=0
    _
  %s7 = ssub.s32 1, %s5
  %s8 = scalar_select 0, %s7, %s5
  $region1: #{tpu_custom_call.1} parent=0
    #allocation2 [shape = 'u8[16384]{0}', space=vmem, size = 0x4000, scoped, tag = 'input window, operand 1, single buffered']
    #allocation3 [shape = 's32[1]{0}', space=sflag, size = 0x4, scoped, tag = 'scoped memory for tpu_custom_call.1']
    #allocation4 [shape = 's32[1]{0}', space=sflag, size = 0x4, scoped, tag = 'scoped memory for tpu_custom_call.1']
    #allocation5 [shape = 'u8[16384]{0}', space=vmem, size = 0x4000, scoped, tag = 'output window, operand 0, single buffered']
    %9 = vsyncpa [#allocation3], 0
    %10 = vsyncpa [#allocation4], 0
    // Predicated region
    $region2: #{tpu_custom_call.1} parent=1 // pred_check
      _
    $region3: #{tpu_custom_call.1} parent=1 // pred_check_branch
      %12 = sbr.rel (0) target = $region5
    $region4: #{tpu_custom_call.1} parent=1 // pred_region
      _
    $region5: #{tpu_custom_call.1} parent=1 // pred_fallthru
      _
    // Predicated region
    $region6: #{tpu_custom_call.1} parent=1 // pred_check
      _
    $region7: #{tpu_custom_call.1} parent=1 // pred_check_branch
      %14 = sbr.rel (0) target = $region9
    $region8: #{tpu_custom_call.1} parent=1 // pred_region
      %s16 = ssub.s32 512, 512
      %17 = vsyncadd [#allocation3], %s16
      %s18 = sshll.u32 [#allocation2], 4
      %s19 = int_to_ptr.vmem [resolvable:$true] %s18
      %24 = dma.hbm_to_vmem [thread:$0]  %s1, 512, %s19, [#allocation3], 128, 128, 8
    $region9: #{tpu_custom_call.1} parent=1 // pred_fallthru
      _
    // Predicated region
    $region10: #{tpu_custom_call.1} parent=1 // pred_check
      _
    $region11: #{tpu_custom_call.1} parent=1 // pred_check_branch
      %26 = sbr.rel (0) target = $region13
    $region12: #{tpu_custom_call.1} parent=1 // pred_region
      _
    $region13: #{tpu_custom_call.1} parent=1 // pred_fallthru
      _
    // Predicated region
    $region14: #{tpu_custom_call.1} parent=1 // pred_check
      _
    $region15: #{tpu_custom_call.1} parent=1 // pred_check_branch
      %28 = sbr.rel (0) target = $region17
    $region16: #{tpu_custom_call.1} parent=1 // pred_region
      _
    $region17: #{tpu_custom_call.1} parent=1 // pred_fallthru
      _
    // Predicated region
    $region18: #{tpu_custom_call.1} parent=1 // pred_check
      _
    $region19: #{tpu_custom_call.1} parent=1 // pred_check_branch
      %30 = sbr.rel (0) target = $region21
    $region20: #{tpu_custom_call.1} parent=1 // pred_region
      %31 = dma.done [#allocation3], 512
    $region21: #{tpu_custom_call.1} parent=1 // pred_fallthru
      _
    %v32 = vld [vmem:[%s0] sm:$0xff]
    %v33 = vld [vmem:[%s0 + $0x8] sm:$0xff]
    %v34 = vld [vmem:[%s0 + $0x10] sm:$0xff]
    %v35 = vld [vmem:[%s0 + $0x18] sm:$0xff]
    %v36 = vld [vmem:[#allocation2] sm:$0xff]
    %v37 = vld [vmem:[#allocation2 + $0x8] sm:$0xff]
    %v38 = vld [vmem:[#allocation2 + $0x10] sm:$0xff]
    %v39 = vld [vmem:[#allocation2 + $0x18] sm:$0xff]
    %v40 = vld [vmem:[%s2] sm:$0xff]
    %v41 = vld [vmem:[%s2 + $0x8] sm:$0xff]
    %v42 = vld [vmem:[%s2 + $0x10] sm:$0xff]
    %v43 = vld [vmem:[%s2 + $0x18] sm:$0xff]
    %v44 = vld [vmem:[%s3] sm:$0x1]
    %45 = vmatprep.subr.mxu0 0.0
    %46 = vmatpush1.xpose.msra.mxu0 0.0
    %47 = vmatprep.subr.mxu0 0.0
    %48 = vmatpush1.xpose.msra.mxu0 0.0
    %49 = vmatprep.subr.mxu0 0.0
    %50 = vmatpush1.xpose.msra.mxu0 0.0
    %51 = vmatprep.subr.mxu0 0.0
    %52 = vmatpush1.xpose.msra.mxu0 0.0
    %53 = vmatprep.subr.mxu0 0.0
    %54 = vmatpush1.xpose.msra.mxu0 0.0
    %55 = vmatprep.subr.mxu0 0.0
    %56 = vmatpush1.xpose.msra.mxu0 0.0
    %57 = vmatprep.subr.mxu0 0.0
    %58 = vmatpush1.xpose.msra.mxu0 0.0
    %59 = vmatprep.subr.mxu0 0.0
    %60 = vmatpush1.xpose.msra.mxu0 0.0
    %61 = vmatprep.subr.mxu0 0.0
    %62 = vmatpush1.xpose.msra.mxu0 0.0
    %63 = vmatprep.subr.mxu0 0.0
    %64 = vmatpush1.xpose.msra.mxu0 0.0
    %65 = vmatprep.subr.mxu0 0.0
    %66 = vmatpush1.xpose.msra.mxu0 0.0
    %67 = vmatprep.subr.mxu0 0.0
    %68 = vmatpush1.xpose.msra.mxu0 0.0
    %69 = vmatprep.subr.mxu0 0.0
    %70 = vmatpush1.xpose.msra.mxu0 %v39
    %71 = vmatprep.subr.mxu0 0.0
    %72 = vmatpush1.xpose.msra.mxu0 %v38
    %73 = vmatprep.subr.mxu0 0.0
    %74 = vmatpush1.xpose.msra.mxu0 %v37
    %75 = vmatprep.subr.mxu0 0.0
    %76 = vmatpush1.xpose.msra.mxu0 %v36
    %77 = vmatprep.subr.mxu0 0.0
    %78 = vmatpush2.xpose.msra.mxu0 0.0
    %79 = vmatprep.subr.mxu0 0.0
    %80 = vmatpush2.xpose.msra.mxu0 0.0
    %81 = vmatprep.subr.mxu0 0.0
    %82 = vmatpush2.xpose.msra.mxu0 0.0
    %83 = vmatprep.subr.mxu0 0.0
    %84 = vmatpush2.xpose.msra.mxu0 0.0
    %85 = vmatprep.subr.mxu0 0.0
    %86 = vmatpush2.xpose.msra.mxu0 0.0
    %87 = vmatprep.subr.mxu0 0.0
    %88 = vmatpush2.xpose.msra.mxu0 0.0
    %89 = vmatprep.subr.mxu0 0.0
    %90 = vmatpush2.xpose.msra.mxu0 0.0
    %91 = vmatprep.subr.mxu0 0.0
    %92 = vmatpush2.xpose.msra.mxu0 0.0
    %93 = vmatprep.subr.mxu0 0.0
    %94 = vmatpush2.xpose.msra.mxu0 0.0
    %95 = vmatprep.subr.mxu0 0.0
    %96 = vmatpush2.xpose.msra.mxu0 0.0
    %97 = vmatprep.subr.mxu0 0.0
    %98 = vmatpush2.xpose.msra.mxu0 0.0
    %99 = vmatprep.subr.mxu0 0.0
    %100 = vmatpush2.xpose.msra.mxu0 0.0
    %101 = vmatprep.subr.mxu0 0.0
    %102 = vmatpush2.xpose.msra.mxu0 0.0
    %103 = vmatprep.subr.mxu0 0.0
    %104 = vmatpush2.xpose.msra.mxu0 0.0
    %105 = vmatprep.subr.mxu0 0.0
    %106 = vmatpush2.xpose.msra.mxu0 0.0
    %107 = vmatprep.subr.mxu0 0.0
    %108 = vmatpush2.xpose.msra.mxu0 0.0
    %109 = vmatprep.mubr.f32.mxu0 0.0
    %110 = vmatmul.mubr.f32.gmra.mxu0 %v32
    %v111 = vpop.f32.mrf.mxu0
    %v112 = vadd.f32 0.0, %v111
    %v113 = vpop.f32.mrf.mxu0
    %114 = vmatprep.mubr.f32.mxu0 0.0
    %115 = vmatmul.mubr.f32.gmra.mxu0 %v33
    %v116 = vpop.f32.mrf.mxu0
    %v117 = vadd.f32 0.0, %v116
    %v118 = vpop.f32.mrf.mxu0
    %119 = vmatprep.mubr.f32.mxu0 0.0
    %120 = vmatmul.mubr.f32.gmra.mxu0 %v34
    %v121 = vpop.f32.mrf.mxu0
    %v122 = vadd.f32 0.0, %v121
    %v123 = vpop.f32.mrf.mxu0
    %124 = vmatprep.mubr.f32.mxu0 0.0
    %125 = vmatmul.mubr.f32.gmra.mxu0 %v35
    %v126 = vpop.f32.mrf.mxu0
    %v127 = vadd.f32 0.0, %v126
    %v128 = vpop.f32.mrf.mxu0
    %129 = vdwg.mxu0
    %131 = vset.pattern.permute.xlu0 0
    %132 = vperm.xlu0 %131, %v40
    %v133 = vpop.permute.xlu0 %132
    %136 = vset.pattern.permute.xlu0 0
    %137 = vperm.xlu0 %136, %v41
    %v138 = vpop.permute.xlu0 %137
    %141 = vset.pattern.permute.xlu0 0
    %142 = vperm.xlu0 %141, %v42
    %v143 = vpop.permute.xlu0 %142
    %146 = vset.pattern.permute.xlu0 0
    %147 = vperm.xlu0 %146, %v43
    %v148 = vpop.permute.xlu0 %147
    %v151 = vlaneseq
    %v152 = vshrl.u32 %v151, 7
    %v153 = vsub.s32 0, %v152
    %v154 = vrot.slane %v44, %v153
    %v156 = vadd.f32 %v133, %v154
    %v157 = vadd.f32 %v138, %v154
    %v158 = vadd.f32 %v143, %v154
    %v159 = vadd.f32 %v148, %v154
    %v160 = vmul.f32 %v112, 2.0
    %v161 = vmul.f32 %v117, 2.0
    %v162 = vmul.f32 %v122, 2.0
    %v163 = vmul.f32 %v127, 2.0
    %v164 = vsub.f32 %v156, %v160
    %v165 = vsub.f32 %v157, %v161
    %v166 = vsub.f32 %v158, %v162
    %v167 = vsub.f32 %v159, %v163
    %v168 = vmax.f32 %v164, 0.0
    %v169 = vmax.f32 %v165, 0.0
    %v170 = vmax.f32 %v166, 0.0
    %v171 = vmax.f32 %v167, 0.0
    %vm172 = vcmask 261120
    %173 = vst.msk [vmem:[#allocation5] sm:$0xff] %vm172, %v168
    %174 = vst.msk [vmem:[#allocation5 + $0x8] sm:$0xff] %vm172, %v169
    %175 = vst.msk [vmem:[#allocation5 + $0x10] sm:$0xff] %vm172, %v170
    %176 = vst.msk [vmem:[#allocation5 + $0x18] sm:$0xff] %vm172, %v171
    // Predicated region
    $region22: #{tpu_custom_call.1} parent=1 // pred_check
      _
    $region23: #{tpu_custom_call.1} parent=1 // pred_check_branch
      %178 = sbr.rel (0) target = $region25
    $region24: #{tpu_custom_call.1} parent=1 // pred_region
      %s180 = ssub.s32 512, 512
      %181 = vsyncadd [#allocation4], %s180
      %s182 = sshll.u32 [#allocation5], 4
      %s183 = int_to_ptr.vmem [resolvable:$true] %s182
      %188 = dma.vmem_to_hbm [thread:$0]  %s183, 512, %s4, [#allocation4], 128, 128, 8
    $region25: #{tpu_custom_call.1} parent=1 // pred_fallthru
      _
    // Predicated region
    $region26: #{tpu_custom_call.1} parent=1 // pred_check
      _
    $region27: #{tpu_custom_call.1} parent=1 // pred_check_branch
      %190 = sbr.rel (0) target = $region29
    $region28: #{tpu_custom_call.1} parent=1 // pred_region
      %191 = dma.done [#allocation4], 512
    $region29: #{tpu_custom_call.1} parent=1 // pred_fallthru
      _
    %192 = vsyncpa [#allocation3], 1
    %193 = vsyncpa [#allocation4], 1

</llo_original>
